<compile_context>
chip_gen: v6e
topology: v6e:2x2x1
jax: 0.10.0
libtpu: 0.0.40
codegen_flags: <defaults>
</compile_context>

<pallas_src>
import functools

import jax
import jax.numpy as jnp
from jax.experimental import pallas as pl
from jax.experimental.pallas import tpu as pltpu

_MiB = 1 << 20
_MIN_SPLIT_ROWS = 128  # only split the batch into >=2 row tiles above 2*this


def _mlp_fused_kernel(*refs, num_layers):
    """refs = (x_ref, w0_ref, b0_ref, w1_ref, b1_ref, ..., o_ref).

    Computes fc0 -> (relu -> fc_i)* on one row tile, entirely in VMEM/vregs.
    """
    x_ref = refs[0]
    o_ref = refs[-1]
    wb_refs = refs[1:-1]

    h = x_ref[...].astype(jnp.float32)
    for layer in range(num_layers):
        # Upcast is exact for bf16-stored params; accumulation stays f32.
        w = wb_refs[2 * layer][...].astype(jnp.float32)      # [c_in_l, c_out_l]
        b = wb_refs[2 * layer + 1][...].astype(jnp.float32)  # [1, c_out_l]
        if layer > 0:
            h = jnp.maximum(h, 0.0)   # ReLU on the *input* of layers 1..L-1
        h = jnp.dot(h, w, preferred_element_type=jnp.float32) + b
    o_ref[...] = h.astype(o_ref.dtype)


def _round_up(v, m):
    return ((v + m - 1) // m) * m


def _choose_row_tile(n, max_tm):
    """Row tile: full batch when small; >=2 grid steps (v7x megacore) when big."""
    if n < 2 * _MIN_SPLIT_ROWS:
        return n  # single full-extent block; legal for any n (equals array dim)
    # Split so the grid has at least 2 steps, cap at max_tm, keep multiple of 8.
    return min(max_tm, _round_up(pl.cdiv(n, 2), 8))


def mlp_forward_fused(x, prepared_params, *, max_tm=512):
    """Run the whole MLP in one pallas_call.

    x:               [N, C_in] float32
    prepared_params: list of (w_io [C_in_l, C_out_l], b2d [1, C_out_l]) per layer
                     (already transposed / reshaped once by prepare_params()).
    """
    n, c_in = x.shape
    num_layers = len(prepared_params)
    assert num_layers >= 1
    assert prepared_params[0][0].shape[0] == c_in
    c_out = prepared_params[-1][0].shape[1]

    tm = _choose_row_tile(n, max_tm)
    grid = (pl.cdiv(n, tm),)  # ragged last block: masked read/writeback, no pad/slice

    flat_args = [x]
    for w_io, b2d in prepared_params:
        flat_args.append(w_io)
        flat_args.append(b2d)

    kernel = functools.partial(_mlp_fused_kernel, num_layers=num_layers)

    # --- VMEM sizing / compiler params --------------------------------------
    single_buffer_ok = hasattr(pl, "Buffered")
    wbytes = sum(
        int(w.size) * w.dtype.itemsize + int(b.size) * b.dtype.itemsize
        for w, b in prepared_params
    )
    act_bytes = 2 * tm * c_in * x.dtype.itemsize + 2 * tm * c_out * x.dtype.itemsize
    weight_bufs = 1 if single_buffer_ok else 2
    vmem_need = weight_bufs * wbytes + act_bytes + 2 * _MiB  # + headroom
    # TODO(synk): if vmem_need approaches ~48 MiB (v7x has 64 MiB physical VMEM),
    #   switch to tiling the hidden (K/N) dims instead of keeping all layers resident.
    vmem_limit = int(min(64 * _MiB, max(32 * _MiB, 2 * vmem_need)))

    flops = 2 * n * sum(int(w.shape[0]) * int(w.shape[1]) for w, _ in prepared_params)
    bytes_accessed = (
        n * c_in * x.dtype.itemsize + n * c_out * x.dtype.itemsize + wbytes
    )

    def _const_spec(shape, single_buf):
        index_map = lambda i: (0,) * len(shape)  # constant -> fetched once, resident
        if single_buf:
            return pl.BlockSpec(shape, index_map, pipeline_mode=pl.Buffered(1))
        return pl.BlockSpec(shape, index_map)

    def _build(single_buf):
        in_specs = [pl.BlockSpec((tm, c_in), lambda i: (i, 0))]  # x row tile
        for w_io, b2d in prepared_params:
            ci, co = w_io.shape
            in_specs.append(_const_spec((ci, co), single_buf))
            in_specs.append(_const_spec((1, co), single_buf))
        return pl.pallas_call(
            kernel,
            out_shape=jax.ShapeDtypeStruct((n, c_out), x.dtype),
            grid_spec=pltpu.PrefetchScalarGridSpec(
                num_scalar_prefetch=0,
                grid=grid,
                in_specs=in_specs,
                out_specs=pl.BlockSpec((tm, c_out), lambda i: (i, 0)),
            ),
            compiler_params=pltpu.CompilerParams(
                dimension_semantics=("parallel",),  # shard row tiles across v7x TCs
                vmem_limit_bytes=vmem_limit,
            ),
            cost_estimate=pl.CostEstimate(
                flops=flops, transcendentals=0, bytes_accessed=bytes_accessed
            ),
        )

    try:
        return _build(single_buffer_ok)(*flat_args)
    except Exception:
        if not single_buffer_ok:
            raise
        # Fallback for jax versions without BlockSpec pipeline_mode support.
        return _build(False)(*flat_args)


def prepare_params(params, *, param_dtype=jnp.float32):
    """One-time prep: PyTorch (W [out,in], b [out]) -> (W.T [in,out], b [1,out]).

    Optionally store params in bf16 (half the resident VMEM / weight DMA);
    the kernel still accumulates in f32.  Do this ONCE at init so no transpose
    or cast sits in the per-forward hot path.
    """
    prepared = []
    for w, b in params:
        w_io = jnp.asarray(w).T.astype(param_dtype)
        b2d = jnp.asarray(b).reshape(1, -1).astype(param_dtype)
        prepared.append((w_io, b2d))
    return prepared


def init_mlp_params(key, channels):
    """Deterministic init matching nn.Linear shapes: W [out,in], b [out]."""
    params = []
    for i in range(1, len(channels)):
        key, kw, kb = jax.random.split(key, 3)
        fan_in = channels[i - 1]
        bound = 1.0 / jnp.sqrt(fan_in)
        w = jax.random.uniform(
            kw, (channels[i], channels[i - 1]), jnp.float32, -bound, bound
        )
        b = jax.random.uniform(kb, (channels[i],), jnp.float32, -bound, bound)
        params.append((w, b))
    return params


def mlp_reference(x, params):
    """Pure-JAX reference matching the PyTorch forward exactly (f32 params)."""
    out = x
    for i, (w, b) in enumerate(params):
        if i > 0:
            out = jnp.maximum(out, 0.0)
        out = out @ w.T + b
    return out


def mlp_reference_prepared(x, prepared):
    """Reference using the prepared (possibly bf16-stored) params, f32 math."""
    out = x.astype(jnp.float32)
    for i, (w, b) in enumerate(prepared):
        if i > 0:
            out = jnp.maximum(out, 0.0)
        out = out @ w.astype(jnp.float32) + b.astype(jnp.float32)
    return out


if __name__ == "__main__":
    key = jax.random.PRNGKey(0)
    channels = (32, 64, 8)  # MLP([32, 64, 8])

    params = init_mlp_params(key, channels)          # PyTorch convention
    prepared_f32 = prepare_params(params)            # transposed once, f32

    # --- case 1: small batch (shipped problem size), f32 params -------------
    key, kx = jax.random.split(key)
    x_small = jax.random.normal(kx, (16, channels[0]), jnp.float32)
    y = jax.block_until_ready(mlp_forward_fused(x_small, prepared_f32))
    y_ref = mlp_reference(x_small, params)
    assert y.shape == (16, channels[-1])
    assert jnp.allclose(y, y_ref, atol=1e-4, rtol=1e-4), "f32 small-batch mismatch"

    # --- case 2: ragged batch -> grid of 2 with masked partial last block ---
    key, kx2 = jax.random.split(key)
    x_big = jax.random.normal(kx2, (300, channels[0]), jnp.float32)
    y2 = jax.block_until_ready(mlp_forward_fused(x_big, prepared_f32))
    y2_ref = mlp_reference(x_big, params)
    assert y2.shape == (300, channels[-1])
    assert jnp.allclose(y2, y2_ref, atol=1e-4, rtol=1e-4), "ragged-batch mismatch"

    # --- case 3: bf16-stored weights/biases, f32 accumulation ----------------
    prepared_bf16 = prepare_params(params, param_dtype=jnp.bfloat16)
    y3 = jax.block_until_ready(mlp_forward_fused(x_small, prepared_bf16))
    y3_ref = mlp_reference_prepared(x_small, prepared_bf16)
    assert jnp.allclose(y3, y3_ref, atol=1e-3, rtol=1e-3), "bf16-weight mismatch"

    print("KERNEL_OK")
</pallas_src>

<mosaic_0001>
module attributes {stable_mosaic.version = 11 : i64} {
  func.func @_mlp_fused_kernel(%arg0: i32, %arg1: memref<16x32xf32, #tpu.memory_space<vmem>>, %arg2: memref<32x64xf32, #tpu.memory_space<vmem>>, %arg3: memref<1x64xf32, #tpu.memory_space<vmem>>, %arg4: memref<64x8xf32, #tpu.memory_space<vmem>>, %arg5: memref<1x8xf32, #tpu.memory_space<vmem>>, %arg6: memref<16x8xf32, #tpu.memory_space<vmem>>) attributes {dimension_semantics = [#tpu.dimension_semantics<parallel>], iteration_bounds = array<i64: 1>, scalar_prefetch = 0 : i64, scratch_operands = 0 : i64, tpu.core_type = #tpu.core_type<tc>, window_params = [{transform_indices = @transform_0, window_bounds = array<i64: 16, 32>}, {pipeline_mode = #tpu.pipeline_mode<synchronous>, transform_indices = @transform_1, window_bounds = array<i64: 32, 64>}, {pipeline_mode = #tpu.pipeline_mode<synchronous>, transform_indices = @transform_2, window_bounds = array<i64: 1, 64>}, {pipeline_mode = #tpu.pipeline_mode<synchronous>, transform_indices = @transform_3, window_bounds = array<i64: 64, 8>}, {pipeline_mode = #tpu.pipeline_mode<synchronous>, transform_indices = @transform_4, window_bounds = array<i64: 1, 8>}, {transform_indices = @transform_5, window_bounds = array<i64: 16, 8>}]} {
    %c0 = arith.constant 0 : index
    %c0_0 = arith.constant 0 : index
    %0 = vector.load %arg1[%c0, %c0_0] : memref<16x32xf32, #tpu.memory_space<vmem>>, vector<16x32xf32>
    %c0_1 = arith.constant 0 : index
    %c0_2 = arith.constant 0 : index
    %1 = vector.load %arg2[%c0_1, %c0_2] : memref<32x64xf32, #tpu.memory_space<vmem>>, vector<32x64xf32>
    %c0_3 = arith.constant 0 : index
    %c0_4 = arith.constant 0 : index
    %2 = vector.load %arg3[%c0_3, %c0_4] : memref<1x64xf32, #tpu.memory_space<vmem>>, vector<1x64xf32>
    %cst = arith.constant dense<0.000000e+00> : vector<16x64xf32>
    %3 = tpu.matmul %0, %1, %cst {dimension_numbers = #tpu.dot_dimension_numbers<[1], [0], [0], [1], [0, 0, 1, 1], [], []>} : vector<16x32xf32>, vector<32x64xf32>, vector<16x64xf32> -> vector<16x64xf32>
    %4 = vector.broadcast %2 : vector<1x64xf32> to vector<16x64xf32>
    %5 = arith.addf %3, %4 : vector<16x64xf32>
    %c0_5 = arith.constant 0 : index
    %c0_6 = arith.constant 0 : index
    %6 = vector.load %arg4[%c0_5, %c0_6] : memref<64x8xf32, #tpu.memory_space<vmem>>, vector<64x8xf32>
    %c0_7 = arith.constant 0 : index
    %c0_8 = arith.constant 0 : index
    %7 = vector.load %arg5[%c0_7, %c0_8] : memref<1x8xf32, #tpu.memory_space<vmem>>, vector<1x8xf32>
    %cst_9 = arith.constant 0.000000e+00 : f32
    %8 = vector.broadcast %cst_9 : f32 to vector<16x64xf32>
    %9 = arith.maximumf %5, %8 : vector<16x64xf32>
    %cst_10 = arith.constant dense<0.000000e+00> : vector<16x8xf32>
    %10 = tpu.matmul %9, %6, %cst_10 {dimension_numbers = #tpu.dot_dimension_numbers<[1], [0], [0], [1], [0, 0, 1, 1], [], []>} : vector<16x64xf32>, vector<64x8xf32>, vector<16x8xf32> -> vector<16x8xf32>
    %11 = vector.broadcast %7 : vector<1x8xf32> to vector<16x8xf32>
    %12 = arith.addf %10, %11 : vector<16x8xf32>
    %c0_11 = arith.constant 0 : index
    %c0_12 = arith.constant 0 : index
    %13 = vector.load %arg6[%c0_11, %c0_12] : memref<16x8xf32, #tpu.memory_space<vmem>>, vector<16x8xf32>
    tpu.vector_store %arg6[%c0_11, %c0_12], %12 {strides = array<i32>} : memref<16x8xf32, #tpu.memory_space<vmem>>, vector<16x8xf32>,
    return
  }
  func.func @transform_0(%arg0: i32) -> (i32, i32) {
    %c0_i32 = arith.constant 0 : i32
    %c0_i32_0 = arith.constant 0 : i32
    return %arg0, %c0_i32 : i32, i32
  }
  func.func @transform_1(%arg0: i32) -> (i32, i32) {
    %c0_i32 = arith.constant 0 : i32
    %c0_i32_0 = arith.constant 0 : i32
    %c0_i32_1 = arith.constant 0 : i32
    return %c0_i32, %c0_i32_0 : i32, i32
  }
  func.func @transform_2(%arg0: i32) -> (i32, i32) {
    %c0_i32 = arith.constant 0 : i32
    %c0_i32_0 = arith.constant 0 : i32
    %c0_i32_1 = arith.constant 0 : i32
    return %c0_i32, %c0_i32_0 : i32, i32
  }
  func.func @transform_3(%arg0: i32) -> (i32, i32) {
    %c0_i32 = arith.constant 0 : i32
    %c0_i32_0 = arith.constant 0 : i32
    %c0_i32_1 = arith.constant 0 : i32
    return %c0_i32, %c0_i32_0 : i32, i32
  }
  func.func @transform_4(%arg0: i32) -> (i32, i32) {
    %c0_i32 = arith.constant 0 : i32
    %c0_i32_0 = arith.constant 0 : i32
    %c0_i32_1 = arith.constant 0 : i32
    return %c0_i32, %c0_i32_0 : i32, i32
  }
  func.func @transform_5(%arg0: i32) -> (i32, i32) {
    %c0_i32 = arith.constant 0 : i32
    %c0_i32_0 = arith.constant 0 : i32
    return %arg0, %c0_i32 : i32, i32
  }
}

module attributes {stable_mosaic.version = 11 : i64} {
  func.func @_mlp_fused_kernel(%arg0: i32, %arg1: memref<16x32xf32, #tpu.memory_space<vmem>>, %arg2: memref<32x64xf32, #tpu.memory_space<vmem>>, %arg3: memref<1x64xf32, #tpu.memory_space<vmem>>, %arg4: memref<64x8xf32, #tpu.memory_space<vmem>>, %arg5: memref<1x8xf32, #tpu.memory_space<vmem>>, %arg6: memref<16x8xf32, #tpu.memory_space<vmem>>) attributes {dimension_semantics = [#tpu.dimension_semantics<parallel>], iteration_bounds = array<i64: 1>, scalar_prefetch = 0 : i64, scratch_operands = 0 : i64, tpu.core_type = #tpu.core_type<tc>, window_params = [{transform_indices = @transform_0, window_bounds = array<i64: 16, 32>}, {pipeline_mode = #tpu.pipeline_mode<synchronous>, transform_indices = @transform_1, window_bounds = array<i64: 32, 64>}, {pipeline_mode = #tpu.pipeline_mode<synchronous>, transform_indices = @transform_2, window_bounds = array<i64: 1, 64>}, {pipeline_mode = #tpu.pipeline_mode<synchronous>, transform_indices = @transform_3, window_bounds = array<i64: 64, 8>}, {pipeline_mode = #tpu.pipeline_mode<synchronous>, transform_indices = @transform_4, window_bounds = array<i64: 1, 8>}, {transform_indices = @transform_5, window_bounds = array<i64: 16, 8>}]} {
    %c0 = arith.constant 0 : index
    %c0_0 = arith.constant 0 : index
    %0 = vector.load %arg1[%c0, %c0_0] : memref<16x32xf32, #tpu.memory_space<vmem>>, vector<16x32xf32>
    %c0_1 = arith.constant 0 : index
    %c0_2 = arith.constant 0 : index
    %1 = vector.load %arg2[%c0_1, %c0_2] : memref<32x64xf32, #tpu.memory_space<vmem>>, vector<32x64xf32>
    %c0_3 = arith.constant 0 : index
    %c0_4 = arith.constant 0 : index
    %2 = vector.load %arg3[%c0_3, %c0_4] : memref<1x64xf32, #tpu.memory_space<vmem>>, vector<1x64xf32>
    %cst = arith.constant dense<0.000000e+00> : vector<16x64xf32>
    %3 = tpu.matmul %0, %1, %cst {dimension_numbers = #tpu.dot_dimension_numbers<[1], [0], [0], [1], [0, 0, 1, 1], [], []>} : vector<16x32xf32>, vector<32x64xf32>, vector<16x64xf32> -> vector<16x64xf32>
    %4 = vector.broadcast %2 : vector<1x64xf32> to vector<16x64xf32>
    %5 = arith.addf %3, %4 : vector<16x64xf32>
    %c0_5 = arith.constant 0 : index
    %c0_6 = arith.constant 0 : index
    %6 = vector.load %arg4[%c0_5, %c0_6] : memref<64x8xf32, #tpu.memory_space<vmem>>, vector<64x8xf32>
    %c0_7 = arith.constant 0 : index
    %c0_8 = arith.constant 0 : index
    %7 = vector.load %arg5[%c0_7, %c0_8] : memref<1x8xf32, #tpu.memory_space<vmem>>, vector<1x8xf32>
    %cst_9 = arith.constant 0.000000e+00 : f32
    %8 = vector.broadcast %cst_9 : f32 to vector<16x64xf32>
    %9 = arith.maximumf %5, %8 : vector<16x64xf32>
    %cst_10 = arith.constant dense<0.000000e+00> : vector<16x8xf32>
    %10 = tpu.matmul %9, %6, %cst_10 {dimension_numbers = #tpu.dot_dimension_numbers<[1], [0], [0], [1], [0, 0, 1, 1], [], []>} : vector<16x64xf32>, vector<64x8xf32>, vector<16x8xf32> -> vector<16x8xf32>
    %11 = vector.broadcast %7 : vector<1x8xf32> to vector<16x8xf32>
    %12 = arith.addf %10, %11 : vector<16x8xf32>
    %c0_11 = arith.constant 0 : index
    %c0_12 = arith.constant 0 : index
    %13 = vector.load %arg6[%c0_11, %c0_12] : memref<16x8xf32, #tpu.memory_space<vmem>>, vector<16x8xf32>
    tpu.vector_store %arg6[%c0_11, %c0_12], %12 {strides = array<i32>} : memref<16x8xf32, #tpu.memory_space<vmem>>, vector<16x8xf32>,
    return
  }
  func.func @transform_0(%arg0: i32) -> (i32, i32) {
    %c0_i32 = arith.constant 0 : i32
    %c0_i32_0 = arith.constant 0 : i32
    return %arg0, %c0_i32 : i32, i32
  }
  func.func @transform_1(%arg0: i32) -> (i32, i32) {
    %c0_i32 = arith.constant 0 : i32
    %c0_i32_0 = arith.constant 0 : i32
    %c0_i32_1 = arith.constant 0 : i32
    return %c0_i32, %c0_i32_0 : i32, i32
  }
  func.func @transform_2(%arg0: i32) -> (i32, i32) {
    %c0_i32 = arith.constant 0 : i32
    %c0_i32_0 = arith.constant 0 : i32
    %c0_i32_1 = arith.constant 0 : i32
    return %c0_i32, %c0_i32_0 : i32, i32
  }
  func.func @transform_3(%arg0: i32) -> (i32, i32) {
    %c0_i32 = arith.constant 0 : i32
    %c0_i32_0 = arith.constant 0 : i32
    %c0_i32_1 = arith.constant 0 : i32
    return %c0_i32, %c0_i32_0 : i32, i32
  }
  func.func @transform_4(%arg0: i32) -> (i32, i32) {
    %c0_i32 = arith.constant 0 : i32
    %c0_i32_0 = arith.constant 0 : i32
    %c0_i32_1 = arith.constant 0 : i32
    return %c0_i32, %c0_i32_0 : i32, i32
  }
  func.func @transform_5(%arg0: i32) -> (i32, i32) {
    %c0_i32 = arith.constant 0 : i32
    %c0_i32_0 = arith.constant 0 : i32
    return %arg0, %c0_i32 : i32, i32
  }
}

</mosaic_0001>

<llo_original>
// kernel: tpu_custom_call.1
$region0: #{tpu_custom_call.1}
  #allocation0 [shape = 'u32[]', space=smem, size = 0x4, offset = 0x4, fixed_abs, tag = 'smem constant byte address 0x4 - core index']
  #allocation1 [shape = 'u32[144,128]{1,0:T(1,128)}', space=vmem, size = 0x12000, scoped, tag = 'internal scratch']
  %s0 = inlined_call_operand.vmem [shape: f32[16,32], index: 0, kind: input, shape index: {}]
  %s1 = inlined_call_operand.vmem [shape: f32[32,64], index: 1, kind: input, shape index: {}]
  %s2 = inlined_call_operand.vmem [shape: f32[1,64], index: 2, kind: input, shape index: {}]
  %s3 = inlined_call_operand.vmem [shape: f32[64,8], index: 3, kind: input, shape index: {}]
  %s4 = inlined_call_operand.vmem [shape: f32[1,8], index: 4, kind: input, shape index: {}]
  %s5 = inlined_call_operand.vmem [shape: f32[16,8], index: 5, kind: output, shape index: {}]
  %s6 = sld [smem:[#allocation0]]
  $region30: #{tpu_custom_call.1} parent=0
    _
  %s8 = ssub.s32 1, %s6
  %s9 = scalar_select 0, %s8, %s6
  // Predicated region
  $region2: #{tpu_custom_call.1} parent=0 // pred_check
    _
  $region3: #{tpu_custom_call.1} parent=0 // pred_check_branch
    %11 = sbr.rel (0) target = $region5
  $region4: #{tpu_custom_call.1} parent=0 // pred_region
    _
  $region5: #{tpu_custom_call.1} parent=0 // pred_fallthru
    _
  // Predicated region
  $region6: #{tpu_custom_call.1} parent=0 // pred_check
    _
  $region7: #{tpu_custom_call.1} parent=0 // pred_check_branch
    %13 = sbr.rel (0) target = $region9
  $region8: #{tpu_custom_call.1} parent=0 // pred_region
    _
  $region9: #{tpu_custom_call.1} parent=0 // pred_fallthru
    _
  // Predicated region
  $region10: #{tpu_custom_call.1} parent=0 // pred_check
    _
  $region11: #{tpu_custom_call.1} parent=0 // pred_check_branch
    %15 = sbr.rel (0) target = $region13
  $region12: #{tpu_custom_call.1} parent=0 // pred_region
    _
  $region13: #{tpu_custom_call.1} parent=0 // pred_fallthru
    _
  // Predicated region
  $region14: #{tpu_custom_call.1} parent=0 // pred_check
    _
  $region15: #{tpu_custom_call.1} parent=0 // pred_check_branch
    %17 = sbr.rel (0) target = $region17
  $region16: #{tpu_custom_call.1} parent=0 // pred_region
    _
  $region17: #{tpu_custom_call.1} parent=0 // pred_fallthru
    _
  // Predicated region
  $region18: #{tpu_custom_call.1} parent=0 // pred_check
    _
  $region19: #{tpu_custom_call.1} parent=0 // pred_check_branch
    %19 = sbr.rel (0) target = $region21
  $region20: #{tpu_custom_call.1} parent=0 // pred_region
    _
  $region21: #{tpu_custom_call.1} parent=0 // pred_fallthru
    _
  %v20 = vld [vmem:[%s0] sm:$0xff]
  %v21 = vld [vmem:[%s0 + $0x8] sm:$0xff]
  %v22 = vld [vmem:[%s1] sm:$0xff]
  %v23 = vld [vmem:[%s1 + $0x8] sm:$0xff]
  %v24 = vld [vmem:[%s1 + $0x10] sm:$0xff]
  %v25 = vld [vmem:[%s1 + $0x18] sm:$0xff]
  %v26 = vld [vmem:[%s2] sm:$0x1]
  %v28 = vlaneseq
  %v29 = vshrl.u32 %v28, 7
  %v30 = vsub.s32 0, %v29
  %v31 = vrot.slane %v26, %v30
  %vm33 = vcmask 261120
  %v35 = vsel %vm33, %v20, 0
  %v38 = vsel %vm33, %v21, 0
  %40 = vmatprep.subr.mxu0 0.0
  %41 = vmatpush1.msra.mxu0 0.0
  %42 = vmatprep.subr.mxu0 0.0
  %43 = vmatpush1.msra.mxu0 0.0
  %44 = vmatprep.subr.mxu0 0.0
  %45 = vmatpush1.msra.mxu0 0.0
  %46 = vmatprep.subr.mxu0 0.0
  %47 = vmatpush1.msra.mxu0 0.0
  %48 = vmatprep.subr.mxu0 0.0
  %49 = vmatpush1.msra.mxu0 0.0
  %50 = vmatprep.subr.mxu0 0.0
  %51 = vmatpush1.msra.mxu0 0.0
  %52 = vmatprep.subr.mxu0 0.0
  %53 = vmatpush1.msra.mxu0 0.0
  %54 = vmatprep.subr.mxu0 0.0
  %55 = vmatpush1.msra.mxu0 0.0
  %56 = vmatprep.subr.mxu0 0.0
  %57 = vmatpush1.msra.mxu0 0.0
  %58 = vmatprep.subr.mxu0 0.0
  %59 = vmatpush1.msra.mxu0 0.0
  %60 = vmatprep.subr.mxu0 0.0
  %61 = vmatpush1.msra.mxu0 0.0
  %62 = vmatprep.subr.mxu0 0.0
  %63 = vmatpush1.msra.mxu0 0.0
  %64 = vmatprep.subr.mxu0 0.0
  %65 = vmatpush1.msra.mxu0 %v25
  %66 = vmatprep.subr.mxu0 0.0
  %67 = vmatpush1.msra.mxu0 %v24
  %68 = vmatprep.subr.mxu0 0.0
  %69 = vmatpush1.msra.mxu0 %v23
  %70 = vmatprep.subr.mxu0 0.0
  %71 = vmatpush1.msra.mxu0 %v22
  %72 = vmatprep.subr.mxu0 0.0
  %73 = vmatpush2.msra.mxu0 0.0
  %74 = vmatprep.subr.mxu0 0.0
  %75 = vmatpush2.msra.mxu0 0.0
  %76 = vmatprep.subr.mxu0 0.0
  %77 = vmatpush2.msra.mxu0 0.0
  %78 = vmatprep.subr.mxu0 0.0
  %79 = vmatpush2.msra.mxu0 0.0
  %80 = vmatprep.subr.mxu0 0.0
  %81 = vmatpush2.msra.mxu0 0.0
  %82 = vmatprep.subr.mxu0 0.0
  %83 = vmatpush2.msra.mxu0 0.0
  %84 = vmatprep.subr.mxu0 0.0
  %85 = vmatpush2.msra.mxu0 0.0
  %86 = vmatprep.subr.mxu0 0.0
  %87 = vmatpush2.msra.mxu0 0.0
  %88 = vmatprep.subr.mxu0 0.0
  %89 = vmatpush2.msra.mxu0 0.0
  %90 = vmatprep.subr.mxu0 0.0
  %91 = vmatpush2.msra.mxu0 0.0
  %92 = vmatprep.subr.mxu0 0.0
  %93 = vmatpush2.msra.mxu0 0.0
  %94 = vmatprep.subr.mxu0 0.0
  %95 = vmatpush2.msra.mxu0 0.0
  %96 = vmatprep.subr.mxu0 0.0
  %97 = vmatpush2.msra.mxu0 0.0
  %98 = vmatprep.subr.mxu0 0.0
  %99 = vmatpush2.msra.mxu0 0.0
  %100 = vmatprep.subr.mxu0 0.0
  %101 = vmatpush2.msra.mxu0 0.0
  %102 = vmatprep.subr.mxu0 0.0
  %103 = vmatpush2.msra.mxu0 0.0
  %104 = vmatprep.mubr.f32.mxu0 0.0
  %105 = vmatmul.mubr.f32.gmra.mxu0 %v35
  %v106 = vpop.f32.mrf.mxu0
  %v107 = vadd.f32 %v31, %v106
  %v108 = vpop.f32.mrf.mxu0
  %109 = vmatprep.mubr.f32.mxu0 0.0
  %110 = vmatmul.mubr.f32.gmra.mxu0 %v38
  %v111 = vpop.f32.mrf.mxu0
  %v112 = vadd.f32 %v31, %v111
  %v113 = vpop.f32.mrf.mxu0
  %114 = vdwg.mxu0
  %v115 = vld [vmem:[%s3] sm:$0xff]
  %v116 = vld [vmem:[%s3 + $0x8] sm:$0xff]
  %v117 = vld [vmem:[%s3 + $0x10] sm:$0xff]
  %v118 = vld [vmem:[%s3 + $0x18] sm:$0xff]
  %v119 = vld [vmem:[%s3 + $0x20] sm:$0xff]
  %v120 = vld [vmem:[%s3 + $0x28] sm:$0xff]
  %v121 = vld [vmem:[%s3 + $0x30] sm:$0xff]
  %v122 = vld [vmem:[%s3 + $0x38] sm:$0xff]
  %v123 = vld [vmem:[%s4] sm:$0x1]
  %v124 = vmax.f32 %v107, 0.0
  %v125 = vmax.f32 %v112, 0.0
  %v127 = vlaneseq
  %v128 = vshrl.u32 %v127, 7
  %v129 = vsub.s32 0, %v128
  %v130 = vrot.slane %v123, %v129
  %vm132 = vcmask 523264
  %v134 = vsel %vm132, %v124, 0
  %v137 = vsel %vm132, %v125, 0
  %139 = vmatprep.subr.mxu0 0.0
  %140 = vmatpush1.msra.mxu0 0.0
  %141 = vmatprep.subr.mxu0 0.0
  %142 = vmatpush1.msra.mxu0 0.0
  %143 = vmatprep.subr.mxu0 0.0
  %144 = vmatpush1.msra.mxu0 0.0
  %145 = vmatprep.subr.mxu0 0.0
  %146 = vmatpush1.msra.mxu0 0.0
  %147 = vmatprep.subr.mxu0 0.0
  %148 = vmatpush1.msra.mxu0 0.0
  %149 = vmatprep.subr.mxu0 0.0
  %150 = vmatpush1.msra.mxu0 0.0
  %151 = vmatprep.subr.mxu0 0.0
  %152 = vmatpush1.msra.mxu0 0.0
  %153 = vmatprep.subr.mxu0 0.0
  %154 = vmatpush1.msra.mxu0 0.0
  %155 = vmatprep.subr.mxu0 0.0
  %156 = vmatpush1.msra.mxu0 %v122
  %157 = vmatprep.subr.mxu0 0.0
  %158 = vmatpush1.msra.mxu0 %v121
  %159 = vmatprep.subr.mxu0 0.0
  %160 = vmatpush1.msra.mxu0 %v120
  %161 = vmatprep.subr.mxu0 0.0
  %162 = vmatpush1.msra.mxu0 %v119
  %163 = vmatprep.subr.mxu0 0.0
  %164 = vmatpush1.msra.mxu0 %v118
  %165 = vmatprep.subr.mxu0 0.0
  %166 = vmatpush1.msra.mxu0 %v117
  %167 = vmatprep.subr.mxu0 0.0
  %168 = vmatpush1.msra.mxu0 %v116
  %169 = vmatprep.subr.mxu0 0.0
  %170 = vmatpush1.msra.mxu0 %v115
  %171 = vmatprep.subr.mxu0 0.0
  %172 = vmatpush2.msra.mxu0 0.0
  %173 = vmatprep.subr.mxu0 0.0
  %174 = vmatpush2.msra.mxu0 0.0
  %175 = vmatprep.subr.mxu0 0.0
  %176 = vmatpush2.msra.mxu0 0.0
  %177 = vmatprep.subr.mxu0 0.0
  %178 = vmatpush2.msra.mxu0 0.0
  %179 = vmatprep.subr.mxu0 0.0
  %180 = vmatpush2.msra.mxu0 0.0
  %181 = vmatprep.subr.mxu0 0.0
  %182 = vmatpush2.msra.mxu0 0.0
  %183 = vmatprep.subr.mxu0 0.0
  %184 = vmatpush2.msra.mxu0 0.0
  %185 = vmatprep.subr.mxu0 0.0
  %186 = vmatpush2.msra.mxu0 0.0
  %187 = vmatprep.subr.mxu0 0.0
  %188 = vmatpush2.msra.mxu0 0.0
  %189 = vmatprep.subr.mxu0 0.0
  %190 = vmatpush2.msra.mxu0 0.0
  %191 = vmatprep.subr.mxu0 0.0
  %192 = vmatpush2.msra.mxu0 0.0
  %193 = vmatprep.subr.mxu0 0.0
  %194 = vmatpush2.msra.mxu0 0.0
  %195 = vmatprep.subr.mxu0 0.0
  %196 = vmatpush2.msra.mxu0 0.0
  %197 = vmatprep.subr.mxu0 0.0
  %198 = vmatpush2.msra.mxu0 0.0
  %199 = vmatprep.subr.mxu0 0.0
  %200 = vmatpush2.msra.mxu0 0.0
  %201 = vmatprep.subr.mxu0 0.0
  %202 = vmatpush2.msra.mxu0 0.0
  %203 = vmatprep.mubr.f32.mxu0 0.0
  %204 = vmatmul.mubr.f32.gmra.mxu0 %v134
  %v205 = vpop.f32.mrf.mxu0
  %v206 = vadd.f32 %v130, %v205
  %v207 = vpop.f32.mrf.mxu0
  %208 = vmatprep.mubr.f32.mxu0 0.0
  %209 = vmatmul.mubr.f32.gmra.mxu0 %v137
  %v210 = vpop.f32.mrf.mxu0
  %v211 = vadd.f32 %v130, %v210
  %v212 = vpop.f32.mrf.mxu0
  %213 = vdwg.mxu0
  %vm214 = vcmask 64512
  %215 = vst.msk [vmem:[%s5] sm:$0xff] %vm214, %v206
  %216 = vst.msk [vmem:[%s5 + $0x8] sm:$0xff] %vm214, %v211
  // Predicated region
  $region22: #{tpu_custom_call.1} parent=0 // pred_check
    _
  $region23: #{tpu_custom_call.1} parent=0 // pred_check_branch
    %218 = sbr.rel (0) target = $region25
  $region24: #{tpu_custom_call.1} parent=0 // pred_region
    _
  $region25: #{tpu_custom_call.1} parent=0 // pred_fallthru
    _
  // Predicated region
  $region26: #{tpu_custom_call.1} parent=0 // pred_check
    _
  $region27: #{tpu_custom_call.1} parent=0 // pred_check_branch
    %220 = sbr.rel (0) target = $region29
  $region28: #{tpu_custom_call.1} parent=0 // pred_region
    _
  $region29: #{tpu_custom_call.1} parent=0 // pred_fallthru
    _

// kernel: tpu_custom_call.1
$region0: #{tpu_custom_call.1}
  #allocation0 [shape = 'u32[]', space=smem, size = 0x4, offset = 0x4, fixed_abs, tag = 'smem constant byte address 0x4 - core index']
  #allocation1 [shape = 'u32[144,128]{1,0:T(1,128)}', space=vmem, size = 0x12000, scoped, tag = 'internal scratch']
  %s0 = inlined_call_operand.vmem [shape: f32[16,32], index: 0, kind: input, shape index: {}]
  %s1 = inlined_call_operand.vmem [shape: f32[32,64], index: 1, kind: input, shape index: {}]
  %s2 = inlined_call_operand.vmem [shape: f32[1,64], index: 2, kind: input, shape index: {}]
  %s3 = inlined_call_operand.vmem [shape: f32[64,8], index: 3, kind: input, shape index: {}]
  %s4 = inlined_call_operand.vmem [shape: f32[1,8], index: 4, kind: input, shape index: {}]
  %s5 = inlined_call_operand.vmem [shape: f32[16,8], index: 5, kind: output, shape index: {}]
  %s6 = sld [smem:[#allocation0]]
  $region30: #{tpu_custom_call.1} parent=0
    _
  %s8 = ssub.s32 1, %s6
  %s9 = scalar_select 0, %s8, %s6
  // Predicated region
  $region2: #{tpu_custom_call.1} parent=0 // pred_check
    _
  $region3: #{tpu_custom_call.1} parent=0 // pred_check_branch
    %11 = sbr.rel (0) target = $region5
  $region4: #{tpu_custom_call.1} parent=0 // pred_region
    _
  $region5: #{tpu_custom_call.1} parent=0 // pred_fallthru
    _
  // Predicated region
  $region6: #{tpu_custom_call.1} parent=0 // pred_check
    _
  $region7: #{tpu_custom_call.1} parent=0 // pred_check_branch
    %13 = sbr.rel (0) target = $region9
  $region8: #{tpu_custom_call.1} parent=0 // pred_region
    _
  $region9: #{tpu_custom_call.1} parent=0 // pred_fallthru
    _
  // Predicated region
  $region10: #{tpu_custom_call.1} parent=0 // pred_check
    _
  $region11: #{tpu_custom_call.1} parent=0 // pred_check_branch
    %15 = sbr.rel (0) target = $region13
  $region12: #{tpu_custom_call.1} parent=0 // pred_region
    _
  $region13: #{tpu_custom_call.1} parent=0 // pred_fallthru
    _
  // Predicated region
  $region14: #{tpu_custom_call.1} parent=0 // pred_check
    _
  $region15: #{tpu_custom_call.1} parent=0 // pred_check_branch
    %17 = sbr.rel (0) target = $region17
  $region16: #{tpu_custom_call.1} parent=0 // pred_region
    _
  $region17: #{tpu_custom_call.1} parent=0 // pred_fallthru
    _
  // Predicated region
  $region18: #{tpu_custom_call.1} parent=0 // pred_check
    _
  $region19: #{tpu_custom_call.1} parent=0 // pred_check_branch
    %19 = sbr.rel (0) target = $region21
  $region20: #{tpu_custom_call.1} parent=0 // pred_region
    _
  $region21: #{tpu_custom_call.1} parent=0 // pred_fallthru
    _
  %v20 = vld [vmem:[%s0] sm:$0xff]
  %v21 = vld [vmem:[%s0 + $0x8] sm:$0xff]
  %v22 = vld [vmem:[%s1] sm:$0xff]
  %v23 = vld [vmem:[%s1 + $0x8] sm:$0xff]
  %v24 = vld [vmem:[%s1 + $0x10] sm:$0xff]
  %v25 = vld [vmem:[%s1 + $0x18] sm:$0xff]
  %v26 = vld [vmem:[%s2] sm:$0x1]
  %v28 = vlaneseq
  %v29 = vshrl.u32 %v28, 7
  %v30 = vsub.s32 0, %v29
  %v31 = vrot.slane %v26, %v30
  %vm33 = vcmask 261120
  %v35 = vsel %vm33, %v20, 0
  %v38 = vsel %vm33, %v21, 0
  %40 = vmatprep.subr.mxu0 0.0
  %41 = vmatpush1.msra.mxu0 0.0
  %42 = vmatprep.subr.mxu0 0.0
  %43 = vmatpush1.msra.mxu0 0.0
  %44 = vmatprep.subr.mxu0 0.0
  %45 = vmatpush1.msra.mxu0 0.0
  %46 = vmatprep.subr.mxu0 0.0
  %47 = vmatpush1.msra.mxu0 0.0
  %48 = vmatprep.subr.mxu0 0.0
  %49 = vmatpush1.msra.mxu0 0.0
  %50 = vmatprep.subr.mxu0 0.0
  %51 = vmatpush1.msra.mxu0 0.0
  %52 = vmatprep.subr.mxu0 0.0
  %53 = vmatpush1.msra.mxu0 0.0
  %54 = vmatprep.subr.mxu0 0.0
  %55 = vmatpush1.msra.mxu0 0.0
  %56 = vmatprep.subr.mxu0 0.0
  %57 = vmatpush1.msra.mxu0 0.0
  %58 = vmatprep.subr.mxu0 0.0
  %59 = vmatpush1.msra.mxu0 0.0
  %60 = vmatprep.subr.mxu0 0.0
  %61 = vmatpush1.msra.mxu0 0.0
  %62 = vmatprep.subr.mxu0 0.0
  %63 = vmatpush1.msra.mxu0 0.0
  %64 = vmatprep.subr.mxu0 0.0
  %65 = vmatpush1.msra.mxu0 %v25
  %66 = vmatprep.subr.mxu0 0.0
  %67 = vmatpush1.msra.mxu0 %v24
  %68 = vmatprep.subr.mxu0 0.0
  %69 = vmatpush1.msra.mxu0 %v23
  %70 = vmatprep.subr.mxu0 0.0
  %71 = vmatpush1.msra.mxu0 %v22
  %72 = vmatprep.subr.mxu0 0.0
  %73 = vmatpush2.msra.mxu0 0.0
  %74 = vmatprep.subr.mxu0 0.0
  %75 = vmatpush2.msra.mxu0 0.0
  %76 = vmatprep.subr.mxu0 0.0
  %77 = vmatpush2.msra.mxu0 0.0
  %78 = vmatprep.subr.mxu0 0.0
  %79 = vmatpush2.msra.mxu0 0.0
  %80 = vmatprep.subr.mxu0 0.0
  %81 = vmatpush2.msra.mxu0 0.0
  %82 = vmatprep.subr.mxu0 0.0
  %83 = vmatpush2.msra.mxu0 0.0
  %84 = vmatprep.subr.mxu0 0.0
  %85 = vmatpush2.msra.mxu0 0.0
  %86 = vmatprep.subr.mxu0 0.0
  %87 = vmatpush2.msra.mxu0 0.0
  %88 = vmatprep.subr.mxu0 0.0
  %89 = vmatpush2.msra.mxu0 0.0
  %90 = vmatprep.subr.mxu0 0.0
  %91 = vmatpush2.msra.mxu0 0.0
  %92 = vmatprep.subr.mxu0 0.0
  %93 = vmatpush2.msra.mxu0 0.0
  %94 = vmatprep.subr.mxu0 0.0
  %95 = vmatpush2.msra.mxu0 0.0
  %96 = vmatprep.subr.mxu0 0.0
  %97 = vmatpush2.msra.mxu0 0.0
  %98 = vmatprep.subr.mxu0 0.0
  %99 = vmatpush2.msra.mxu0 0.0
  %100 = vmatprep.subr.mxu0 0.0
  %101 = vmatpush2.msra.mxu0 0.0
  %102 = vmatprep.subr.mxu0 0.0
  %103 = vmatpush2.msra.mxu0 0.0
  %104 = vmatprep.mubr.f32.mxu0 0.0
  %105 = vmatmul.mubr.f32.gmra.mxu0 %v35
  %v106 = vpop.f32.mrf.mxu0
  %v107 = vadd.f32 %v31, %v106
  %v108 = vpop.f32.mrf.mxu0
  %109 = vmatprep.mubr.f32.mxu0 0.0
  %110 = vmatmul.mubr.f32.gmra.mxu0 %v38
  %v111 = vpop.f32.mrf.mxu0
  %v112 = vadd.f32 %v31, %v111
  %v113 = vpop.f32.mrf.mxu0
  %114 = vdwg.mxu0
  %v115 = vld [vmem:[%s3] sm:$0xff]
  %v116 = vld [vmem:[%s3 + $0x8] sm:$0xff]
  %v117 = vld [vmem:[%s3 + $0x10] sm:$0xff]
  %v118 = vld [vmem:[%s3 + $0x18] sm:$0xff]
  %v119 = vld [vmem:[%s3 + $0x20] sm:$0xff]
  %v120 = vld [vmem:[%s3 + $0x28] sm:$0xff]
  %v121 = vld [vmem:[%s3 + $0x30] sm:$0xff]
  %v122 = vld [vmem:[%s3 + $0x38] sm:$0xff]
  %v123 = vld [vmem:[%s4] sm:$0x1]
  %v124 = vmax.f32 %v107, 0.0
  %v125 = vmax.f32 %v112, 0.0
  %v127 = vlaneseq
  %v128 = vshrl.u32 %v127, 7
  %v129 = vsub.s32 0, %v128
  %v130 = vrot.slane %v123, %v129
  %vm132 = vcmask 523264
  %v134 = vsel %vm132, %v124, 0
  %v137 = vsel %vm132, %v125, 0
  %139 = vmatprep.subr.mxu0 0.0
  %140 = vmatpush1.msra.mxu0 0.0
  %141 = vmatprep.subr.mxu0 0.0
  %142 = vmatpush1.msra.mxu0 0.0
  %143 = vmatprep.subr.mxu0 0.0
  %144 = vmatpush1.msra.mxu0 0.0
  %145 = vmatprep.subr.mxu0 0.0
  %146 = vmatpush1.msra.mxu0 0.0
  %147 = vmatprep.subr.mxu0 0.0
  %148 = vmatpush1.msra.mxu0 0.0
  %149 = vmatprep.subr.mxu0 0.0
  %150 = vmatpush1.msra.mxu0 0.0
  %151 = vmatprep.subr.mxu0 0.0
  %152 = vmatpush1.msra.mxu0 0.0
  %153 = vmatprep.subr.mxu0 0.0
  %154 = vmatpush1.msra.mxu0 0.0
  %155 = vmatprep.subr.mxu0 0.0
  %156 = vmatpush1.msra.mxu0 %v122
  %157 = vmatprep.subr.mxu0 0.0
  %158 = vmatpush1.msra.mxu0 %v121
  %159 = vmatprep.subr.mxu0 0.0
  %160 = vmatpush1.msra.mxu0 %v120
  %161 = vmatprep.subr.mxu0 0.0
  %162 = vmatpush1.msra.mxu0 %v119
  %163 = vmatprep.subr.mxu0 0.0
  %164 = vmatpush1.msra.mxu0 %v118
  %165 = vmatprep.subr.mxu0 0.0
  %166 = vmatpush1.msra.mxu0 %v117
  %167 = vmatprep.subr.mxu0 0.0
  %168 = vmatpush1.msra.mxu0 %v116
  %169 = vmatprep.subr.mxu0 0.0
  %170 = vmatpush1.msra.mxu0 %v115
  %171 = vmatprep.subr.mxu0 0.0
  %172 = vmatpush2.msra.mxu0 0.0
  %173 = vmatprep.subr.mxu0 0.0
  %174 = vmatpush2.msra.mxu0 0.0
  %175 = vmatprep.subr.mxu0 0.0
  %176 = vmatpush2.msra.mxu0 0.0
  %177 = vmatprep.subr.mxu0 0.0
  %178 = vmatpush2.msra.mxu0 0.0
  %179 = vmatprep.subr.mxu0 0.0
  %180 = vmatpush2.msra.mxu0 0.0
  %181 = vmatprep.subr.mxu0 0.0
  %182 = vmatpush2.msra.mxu0 0.0
  %183 = vmatprep.subr.mxu0 0.0
  %184 = vmatpush2.msra.mxu0 0.0
  %185 = vmatprep.subr.mxu0 0.0
  %186 = vmatpush2.msra.mxu0 0.0
  %187 = vmatprep.subr.mxu0 0.0
  %188 = vmatpush2.msra.mxu0 0.0
  %189 = vmatprep.subr.mxu0 0.0
  %190 = vmatpush2.msra.mxu0 0.0
  %191 = vmatprep.subr.mxu0 0.0
  %192 = vmatpush2.msra.mxu0 0.0
  %193 = vmatprep.subr.mxu0 0.0
  %194 = vmatpush2.msra.mxu0 0.0
  %195 = vmatprep.subr.mxu0 0.0
  %196 = vmatpush2.msra.mxu0 0.0
  %197 = vmatprep.subr.mxu0 0.0
  %198 = vmatpush2.msra.mxu0 0.0
  %199 = vmatprep.subr.mxu0 0.0
  %200 = vmatpush2.msra.mxu0 0.0
  %201 = vmatprep.subr.mxu0 0.0
  %202 = vmatpush2.msra.mxu0 0.0
  %203 = vmatprep.mubr.f32.mxu0 0.0
  %204 = vmatmul.mubr.f32.gmra.mxu0 %v134
  %v205 = vpop.f32.mrf.mxu0
  %v206 = vadd.f32 %v130, %v205
  %v207 = vpop.f32.mrf.mxu0
  %208 = vmatprep.mubr.f32.mxu0 0.0
  %209 = vmatmul.mubr.f32.gmra.mxu0 %v137
  %v210 = vpop.f32.mrf.mxu0
  %v211 = vadd.f32 %v130, %v210
  %v212 = vpop.f32.mrf.mxu0
  %213 = vdwg.mxu0
  %vm214 = vcmask 64512
  %215 = vst.msk [vmem:[%s5] sm:$0xff] %vm214, %v206
  %216 = vst.msk [vmem:[%s5 + $0x8] sm:$0xff] %vm214, %v211
  // Predicated region
  $region22: #{tpu_custom_call.1} parent=0 // pred_check
    _
  $region23: #{tpu_custom_call.1} parent=0 // pred_check_branch
    %218 = sbr.rel (0) target = $region25
  $region24: #{tpu_custom_call.1} parent=0 // pred_region
    _
  $region25: #{tpu_custom_call.1} parent=0 // pred_fallthru
    _
  // Predicated region
  $region26: #{tpu_custom_call.1} parent=0 // pred_check
    _
  $region27: #{tpu_custom_call.1} parent=0 // pred_check_branch
    %220 = sbr.rel (0) target = $region29
  $region28: #{tpu_custom_call.1} parent=0 // pred_region
    _
  $region29: #{tpu_custom_call.1} parent=0 // pred_fallthru
    _

</llo_original>
